<compile_context>
chip_gen: v6e
topology: v6e:2x2x1
jax: 0.10.0
libtpu: 0.0.40
codegen_flags: <defaults>
</compile_context>

<pallas_src>
import functools

import jax
import jax.numpy as jnp
from jax import lax
from jax.experimental import pallas as pl
from jax.experimental.pallas import tpu as pltpu


def caam_kernel(c_ref, s_ref, w_ref, b2_ref, gamma_ref,
                c_out_ref, s_out_ref, *, hw, hw_pad, mxu_dtype):
    # Block views for one batch item: (C, hw_pad), channels on sublanes,
    # flattened spatial on lanes (hw_pad is a multiple of 128 -> dense vst).
    c = c_ref[0]
    s = s_ref[0]
    w = w_ref[...]          # (C, C)  shared 1x1 conv weight (out_ch, in_ch)
    b2 = b2_ref[...]        # (C, 1)  == 2 * conv bias (pre-doubled in wrapper)
    gamma = gamma_ref[0]    # scalar (SMEM)

    # ---- MModule: conv(c) + conv(s) == W @ (c + s) + 2*bias (shared conv) ----
    x = jnp.dot(w.astype(mxu_dtype), (c + s).astype(mxu_dtype),
                preferred_element_type=jnp.float32) + b2

    if hw_pad != hw:
        # Zero the padded lanes so they do not contaminate the energy sums.
        lane = lax.broadcasted_iota(jnp.int32, x.shape, 1)
        x = jnp.where(lane < hw, x, 0.0)

    # ---- cbam_Module (channel attention): energy[i,j] = sum_p x[i,p]*x[j,p] ----
    # dot_general with last-dim contraction on both operands -> MXU consumes
    # the "transposed" RHS directly (no staged XLU transpose).
    xm = x.astype(mxu_dtype)
    energy = lax.dot_general(xm, xm, (((1,), (1,)), ((), ())),
                             preferred_element_type=jnp.float32)   # (C, C)

    # softmax(max(E)-E) == softmax(-E); stable form exp(min(E)-E) has identical
    # numerics but one fewer cross-lane row reduction.
    row_min = jnp.min(energy, axis=-1, keepdims=True)
    e = jnp.exp(row_min - energy)
    attn = e * pl.reciprocal(jnp.sum(e, axis=-1, keepdims=True), approx=True)

    out = jnp.dot(attn.astype(mxu_dtype), xm,
                  preferred_element_type=jnp.float32)               # (C, hw_pad)
    z = gamma * out + x

    # DModule + Caam_Module residuals:
    #   c_now = sigmoid(z)  * x + c, then + c   ->  sigmoid(z)*x     + 2c
    #   s_now = sigmoid(-z) * x + s, then + s   -> (1-sigmoid(z))*x  + 2s
    sig = jax.nn.sigmoid(z)
    c_out_ref[0, :, :] = sig * x + 2.0 * c
    s_out_ref[0, :, :] = (1.0 - sig) * x + 2.0 * s


def caam_forward(c, s, w, bias, gamma, *, mxu_dtype=jnp.float32):
    """c, s: (B, C, H, W) float32 NCHW.  Returns (c_now, s_now) same shape.

    mxu_dtype: operand dtype for the three MXU matmuls (f32 accumulation).
    Use jnp.bfloat16 on v6e/v7x once C is realistic (>=128); default f32 keeps
    tight numerics at tiny C.
    """
    B, C, H, W = c.shape
    HW = H * W
    hw_pad = pl.cdiv(HW, 128) * 128      # lane-dense blocks / stores

    # Free, contiguous reshape (no XLA transpose / extra HBM pass).
    c2 = c.reshape(B, C, HW).astype(jnp.float32)
    s2 = s.reshape(B, C, HW).astype(jnp.float32)
    if hw_pad != HW:
        pad = ((0, 0), (0, 0), (0, hw_pad - HW))
        c2 = jnp.pad(c2, pad)
        s2 = jnp.pad(s2, pad)

    bias2 = (2.0 * bias).reshape(C, 1).astype(jnp.float32)   # pre-doubled bias
    gamma_arr = jnp.reshape(gamma, (1,)).astype(jnp.float32)
    w = w.astype(jnp.float32)

    kernel = functools.partial(caam_kernel, hw=HW, hw_pad=hw_pad,
                               mxu_dtype=mxu_dtype)

    # Explicit scoped-VMEM budget: 4 I/O blocks x 2 buffers + in-kernel temps,
    # generous 2x headroom, clamped to [32 MiB, 64 MiB] (safe on v5e..v7x).
    block_bytes = C * hw_pad * 4
    vmem_est = 14 * block_bytes + 8 * C * C * 4
    vmem_limit = int(min(max(2 * vmem_est, 32 * 1024 * 1024),
                         64 * 1024 * 1024))

    io_spec = pl.BlockSpec((1, C, hw_pad), lambda b: (b, 0, 0))

    c_out, s_out = pl.pallas_call(
        kernel,
        out_shape=(jax.ShapeDtypeStruct((B, C, hw_pad), jnp.float32),
                   jax.ShapeDtypeStruct((B, C, hw_pad), jnp.float32)),
        grid=(B,),
        in_specs=[
            io_spec,                                           # c (B, C, hw_pad)
            io_spec,                                           # s (B, C, hw_pad)
            pl.BlockSpec((C, C), lambda b: (0, 0)),            # conv weight
            pl.BlockSpec((C, 1), lambda b: (0, 0)),            # 2*conv bias
            pl.BlockSpec(memory_space=pltpu.MemorySpace.SMEM), # gamma scalar
        ],
        out_specs=[io_spec, io_spec],
        compiler_params=pltpu.CompilerParams(
            dimension_semantics=("parallel",),   # batch axis -> both TCs on v7x
            vmem_limit_bytes=vmem_limit),
    )(c2, s2, w, bias2, gamma_arr)

    if hw_pad != HW:
        c_out = c_out[:, :, :HW]
        s_out = s_out[:, :, :HW]
    return c_out.reshape(B, C, H, W), s_out.reshape(B, C, H, W)


def caam_ref(c, s, w, bias, gamma):
    """Pure-JAX reference of the same forward pass (for validation)."""
    B, C, H, W = c.shape
    cf = c.reshape(B, C, -1)
    sf = s.reshape(B, C, -1)
    conv = lambda t: jnp.einsum('oc,bcp->bop', w, t) + bias[None, :, None]
    x = conv(cf) + conv(sf)
    energy = jnp.einsum('bcp,bdp->bcd', x, x)
    energy_new = jnp.max(energy, axis=-1, keepdims=True) - energy
    attn = jax.nn.softmax(energy_new, axis=-1)
    out = jnp.einsum('bcd,bdp->bcp', attn, x)
    z = gamma * out + x
    c_now = jax.nn.sigmoid(z) * x + cf + cf
    s_now = jax.nn.sigmoid(-z) * x + sf + sf
    return c_now.reshape(B, C, H, W), s_now.reshape(B, C, H, W)


if __name__ == "__main__":
    B, C, H, W = 2, 8, 16, 16

    key = jax.random.PRNGKey(0)
    k_c, k_s, k_w, k_b = jax.random.split(key, 4)

    c = jax.random.normal(k_c, (B, C, H, W), dtype=jnp.float32)
    s = jax.random.normal(k_s, (B, C, H, W), dtype=jnp.float32)

    # Deterministic parameter init (1x1 conv: Kaiming-uniform-like bounds).
    k_bound = 1.0 / jnp.sqrt(jnp.float32(C))
    w = jax.random.uniform(k_w, (C, C), jnp.float32, -k_bound, k_bound)
    bias = jax.random.uniform(k_b, (C,), jnp.float32, -k_bound, k_bound)
    gamma = jnp.float32(0.5)   # learned scalar of the attention module

    c_now, s_now = caam_forward(c, s, w, bias, gamma)
    jax.block_until_ready((c_now, s_now))

    c_exp, s_exp = caam_ref(c, s, w, bias, gamma)
    assert jnp.allclose(c_now, c_exp, atol=1e-3, rtol=1e-3)
    assert jnp.allclose(s_now, s_exp, atol=1e-3, rtol=1e-3)

    print("KERNEL_OK")
</pallas_src>

<mosaic_0001>
module attributes {stable_mosaic.version = 11 : i64} {
  func.func @caam_kernel(%arg0: i32, %arg1: memref<1x8x256xf32, #tpu.memory_space<vmem>>, %arg2: memref<1x8x256xf32, #tpu.memory_space<vmem>>, %arg3: memref<8x8xf32, #tpu.memory_space<vmem>>, %arg4: memref<8x1xf32, #tpu.memory_space<vmem>>, %arg5: memref<1xf32, #tpu.memory_space<smem>>, %arg6: memref<1x8x256xf32, #tpu.memory_space<vmem>>, %arg7: memref<1x8x256xf32, #tpu.memory_space<vmem>>) attributes {dimension_semantics = [#tpu.dimension_semantics<parallel>], iteration_bounds = array<i64: 2>, scalar_prefetch = 0 : i64, scratch_operands = 0 : i64, tpu.core_type = #tpu.core_type<tc>, window_params = [{transform_indices = @transform_0, window_bounds = array<i64: 1, 8, 256>}, {transform_indices = @transform_1, window_bounds = array<i64: 1, 8, 256>}, {pipeline_mode = #tpu.pipeline_mode<synchronous>, transform_indices = @transform_2, window_bounds = array<i64: 8, 8>}, {pipeline_mode = #tpu.pipeline_mode<synchronous>, transform_indices = @transform_3, window_bounds = array<i64: 8, 1>}, {transform_indices = @transform_4, window_bounds = array<i64: 1>}, {transform_indices = @transform_5, window_bounds = array<i64: 1, 8, 256>}, {transform_indices = @transform_6, window_bounds = array<i64: 1, 8, 256>}]} {
    %c0 = arith.constant 0 : index
    %c0_0 = arith.constant 0 : index
    %c0_1 = arith.constant 0 : index
    %0 = vector.load %arg1[%c0, %c0_0, %c0_1] : memref<1x8x256xf32, #tpu.memory_space<vmem>>, vector<1x8x256xf32>
    %1 = vector.shape_cast %0 : vector<1x8x256xf32> to vector<8x256xf32>
    %c0_2 = arith.constant 0 : index
    %c0_3 = arith.constant 0 : index
    %c0_4 = arith.constant 0 : index
    %2 = vector.load %arg2[%c0_2, %c0_3, %c0_4] : memref<1x8x256xf32, #tpu.memory_space<vmem>>, vector<1x8x256xf32>
    %3 = vector.shape_cast %2 : vector<1x8x256xf32> to vector<8x256xf32>
    %c0_5 = arith.constant 0 : index
    %c0_6 = arith.constant 0 : index
    %4 = vector.load %arg3[%c0_5, %c0_6] : memref<8x8xf32, #tpu.memory_space<vmem>>, vector<8x8xf32>
    %c0_7 = arith.constant 0 : index
    %c0_8 = arith.constant 0 : index
    %5 = vector.load %arg4[%c0_7, %c0_8] : memref<8x1xf32, #tpu.memory_space<vmem>>, vector<8x1xf32>
    %c0_9 = arith.constant 0 : index
    %6 = memref.load %arg5[%c0_9] : memref<1xf32, #tpu.memory_space<smem>>
    %7 = arith.addf %1, %3 : vector<8x256xf32>
    %cst = arith.constant dense<0.000000e+00> : vector<8x256xf32>
    %8 = tpu.matmul %4, %7, %cst {dimension_numbers = #tpu.dot_dimension_numbers<[1], [0], [0], [1], [0, 0, 1, 1], [], []>} : vector<8x8xf32>, vector<8x256xf32>, vector<8x256xf32> -> vector<8x256xf32>
    %9 = vector.broadcast %5 : vector<8x1xf32> to vector<8x256xf32>
    %10 = arith.addf %8, %9 : vector<8x256xf32>
    %cst_10 = arith.constant dense<0.000000e+00> : vector<8x8xf32>
    %11 = tpu.matmul %10, %10, %cst_10 {dimension_numbers = #tpu.dot_dimension_numbers<[1], [1], [0], [0], [0, 0, 1, 0], [], []>} : vector<8x256xf32>, vector<8x256xf32>, vector<8x8xf32> -> vector<8x8xf32>
    %cst_11 = arith.constant dense<0x7F800000> : vector<8xf32>
    %12 = vector.multi_reduction <minimumf>, %11, %cst_11 [1] : vector<8x8xf32> to vector<8xf32>
    %13 = vector.shape_cast %12 : vector<8xf32> to vector<8x1xf32>
    %14 = vector.broadcast %13 : vector<8x1xf32> to vector<8x8xf32>
    %15 = arith.subf %14, %11 : vector<8x8xf32>
    %16 = math.exp %15 : vector<8x8xf32>
    %cst_12 = arith.constant dense<0.000000e+00> : vector<8xf32>
    %17 = vector.multi_reduction <add>, %16, %cst_12 [1] : vector<8x8xf32> to vector<8xf32>
    %18 = vector.shape_cast %17 : vector<8xf32> to vector<8x1xf32>
    %19 = tpu.reciprocal %18 {approx = true} : vector<8x1xf32> -> vector<8x1xf32>
    %20 = vector.broadcast %19 : vector<8x1xf32> to vector<8x8xf32>
    %21 = arith.mulf %16, %20 : vector<8x8xf32>
    %cst_13 = arith.constant dense<0.000000e+00> : vector<8x256xf32>
    %22 = tpu.matmul %21, %10, %cst_13 {dimension_numbers = #tpu.dot_dimension_numbers<[1], [0], [0], [1], [0, 0, 1, 1], [], []>} : vector<8x8xf32>, vector<8x256xf32>, vector<8x256xf32> -> vector<8x256xf32>
    %23 = vector.broadcast %6 : f32 to vector<8x256xf32>
    %24 = arith.mulf %23, %22 : vector<8x256xf32>
    %25 = arith.addf %24, %10 : vector<8x256xf32>
    %26 = arith.negf %25 : vector<8x256xf32>
    %27 = math.exp %26 : vector<8x256xf32>
    %cst_14 = arith.constant 1.000000e+00 : f32
    %28 = vector.broadcast %cst_14 : f32 to vector<8x256xf32>
    %29 = arith.addf %28, %27 : vector<8x256xf32>
    %30 = arith.divf %28, %29 : vector<8x256xf32>
    %31 = arith.mulf %30, %10 : vector<8x256xf32>
    %cst_15 = arith.constant 2.000000e+00 : f32
    %32 = vector.broadcast %cst_15 : f32 to vector<8x256xf32>
    %33 = arith.mulf %32, %1 : vector<8x256xf32>
    %34 = arith.addf %31, %33 : vector<8x256xf32>
    %c0_16 = arith.constant 0 : index
    %c0_17 = arith.constant 0 : index
    %c0_18 = arith.constant 0 : index
    %35 = vector.load %arg6[%c0_16, %c0_17, %c0_18] : memref<1x8x256xf32, #tpu.memory_space<vmem>>, vector<1x8x256xf32>
    %36 = vector.shape_cast %35 : vector<1x8x256xf32> to vector<8x256xf32>
    %37 = vector.shape_cast %34 : vector<8x256xf32> to vector<1x8x256xf32>
    tpu.vector_store %arg6[%c0_16, %c0_17, %c0_18], %37 {strides = array<i32>} : memref<1x8x256xf32, #tpu.memory_space<vmem>>, vector<1x8x256xf32>,
    %cst_19 = arith.constant 1.000000e+00 : f32
    %38 = vector.broadcast %cst_19 : f32 to vector<8x256xf32>
    %39 = arith.subf %38, %30 : vector<8x256xf32>
    %40 = arith.mulf %39, %10 : vector<8x256xf32>
    %cst_20 = arith.constant 2.000000e+00 : f32
    %41 = vector.broadcast %cst_20 : f32 to vector<8x256xf32>
    %42 = arith.mulf %41, %3 : vector<8x256xf32>
    %43 = arith.addf %40, %42 : vector<8x256xf32>
    %c0_21 = arith.constant 0 : index
    %c0_22 = arith.constant 0 : index
    %c0_23 = arith.constant 0 : index
    %44 = vector.load %arg7[%c0_21, %c0_22, %c0_23] : memref<1x8x256xf32, #tpu.memory_space<vmem>>, vector<1x8x256xf32>
    %45 = vector.shape_cast %44 : vector<1x8x256xf32> to vector<8x256xf32>
    %46 = vector.shape_cast %43 : vector<8x256xf32> to vector<1x8x256xf32>
    tpu.vector_store %arg7[%c0_21, %c0_22, %c0_23], %46 {strides = array<i32>} : memref<1x8x256xf32, #tpu.memory_space<vmem>>, vector<1x8x256xf32>,
    return
  }
  func.func @transform_0(%arg0: i32) -> (i32, i32, i32) {
    %c0_i32 = arith.constant 0 : i32
    %c0_i32_0 = arith.constant 0 : i32
    %c0_i32_1 = arith.constant 0 : i32
    return %arg0, %c0_i32, %c0_i32_0 : i32, i32, i32
  }
  func.func @transform_1(%arg0: i32) -> (i32, i32, i32) {
    %c0_i32 = arith.constant 0 : i32
    %c0_i32_0 = arith.constant 0 : i32
    %c0_i32_1 = arith.constant 0 : i32
    return %arg0, %c0_i32, %c0_i32_0 : i32, i32, i32
  }
  func.func @transform_2(%arg0: i32) -> (i32, i32) {
    %c0_i32 = arith.constant 0 : i32
    %c0_i32_0 = arith.constant 0 : i32
    %c0_i32_1 = arith.constant 0 : i32
    return %c0_i32, %c0_i32_0 : i32, i32
  }
  func.func @transform_3(%arg0: i32) -> (i32, i32) {
    %c0_i32 = arith.constant 0 : i32
    %c0_i32_0 = arith.constant 0 : i32
    %c0_i32_1 = arith.constant 0 : i32
    return %c0_i32, %c0_i32_0 : i32, i32
  }
  func.func @transform_4(%arg0: i32) -> i32 {
    %c0_i32 = arith.constant 0 : i32
    %c0_i32_0 = arith.constant 0 : i32
    return %c0_i32 : i32
  }
  func.func @transform_5(%arg0: i32) -> (i32, i32, i32) {
    %c0_i32 = arith.constant 0 : i32
    %c0_i32_0 = arith.constant 0 : i32
    %c0_i32_1 = arith.constant 0 : i32
    return %arg0, %c0_i32, %c0_i32_0 : i32, i32, i32
  }
  func.func @transform_6(%arg0: i32) -> (i32, i32, i32) {
    %c0_i32 = arith.constant 0 : i32
    %c0_i32_0 = arith.constant 0 : i32
    %c0_i32_1 = arith.constant 0 : i32
    return %arg0, %c0_i32, %c0_i32_0 : i32, i32, i32
  }
}

</mosaic_0001>

<llo_original>
// kernel: tpu_custom_call.1
$region0: #{tpu_custom_call.1}
  #allocation0 [shape = 'u32[]', space=smem, size = 0x4, offset = 0x4, fixed_abs, tag = 'smem constant byte address 0x4 - core index']
  #allocation1 [shape = 'u32[144,128]{1,0:T(1,128)}', space=vmem, size = 0x12000, scoped, tag = 'internal scratch']
  #allocation2 [shape = 'f32[1]{0:T(128)S(6)}', space=smem, size = 0x200, scoped, tag = 'scoped memory for tpu_custom_call.1']
  %s0 = inlined_call_operand.hbm [shape: f32[2,8,256], index: 0, kind: input, shape index: {}]
  %s1 = inlined_call_operand.hbm [shape: f32[2,8,256], index: 1, kind: input, shape index: {}]
  %s2 = inlined_call_operand.vmem [shape: f32[8,8], index: 2, kind: input, shape index: {}]
  %s3 = inlined_call_operand.vmem [shape: f32[8,1], index: 3, kind: input, shape index: {}]
  %s4 = inlined_call_operand.<no memory space> [shape: f32[1], index: 4, kind: input, shape index: {}]
  %s5 = inlined_call_operand.hbm [shape: f32[2,8,256], index: 5, kind: output, shape index: {0}]
  %s6 = inlined_call_operand.hbm [shape: f32[2,8,256], index: 6, kind: output, shape index: {1}]
  %7 = xla_tuple %s5, %s6
  %s8 = sld [smem:[#allocation0]]
  $region69: #{tpu_custom_call.1} parent=0
    _
  %s10 = ssub.s32 1, %s8
  %s11 = scalar_select 0, %s10, %s8
  %12 = sst [smem:[#allocation2]] %s4
  $region1: #{tpu_custom_call.1} parent=0
    #allocation3 [shape = 'u8[16384]{0}', space=vmem, size = 0x4000, scoped, tag = 'input window, operand 0']
    #allocation4 [shape = 's32[2]{0}', space=sflag, size = 0x8, scoped, tag = 'scoped memory for tpu_custom_call.1']
    #allocation5 [shape = 's32[2]{0}', space=sflag, size = 0x8, scoped, tag = 'scoped memory for tpu_custom_call.1']
    #allocation6 [shape = 'u8[16384]{0}', space=vmem, size = 0x4000, scoped, tag = 'input window, operand 1']
    #allocation7 [shape = 's32[2]{0}', space=sflag, size = 0x8, scoped, tag = 'scoped memory for tpu_custom_call.1']
    #allocation8 [shape = 'u8[16384]{0}', space=vmem, size = 0x4000, scoped, tag = 'output window, operand 0']
    #allocation9 [shape = 'u8[16384]{0}', space=vmem, size = 0x4000, scoped, tag = 'output window, operand 1']
    #allocation10 [shape = 's32[2]{0}', space=sflag, size = 0x8, scoped, tag = 'scoped memory for tpu_custom_call.1']
    %13 = vsyncpa [#allocation4], 0
    %s14 = scalar_lea.sflag [#allocation4], 1
    %15 = vsyncpa %s14, 0
    %16 = vsyncpa [#allocation7], 0
    %s17 = scalar_lea.sflag [#allocation7], 1
    %18 = vsyncpa %s17, 0
    %19 = vsyncpa [#allocation5], 0
    %s20 = scalar_lea.sflag [#allocation5], 1
    %21 = vsyncpa %s20, 0
    %22 = vsyncpa [#allocation10], 0
    %s23 = scalar_lea.sflag [#allocation10], 1
    %24 = vsyncpa %s23, 0
    loop: start=0, step=1, limit=4
    $region2: #{tpu_custom_call.1} parent=1 // loop_pre_header
      _
    $region3: #{tpu_custom_call.1} parent=1 // loop_header
      %s26 = sphi 0, %s30
      %p27 = scmp.ge.s32.totalorder %s26, 4
      %s36 = sphi 0, %s38
      %s39 = sphi 0, %s36
      %s40 = sphi 0, %s39
      %s56 = sphi 0, %s40
      %s62 = sphi 0, %s64
      %s65 = sphi 0, %s62
      %s66 = sphi 0, %s65
      %s82 = sphi 0, %s66
      %s86 = sphi 0, %s86
      %s88 = sphi 0, %s86
      %s89 = sphi 0, %s88
      %s103 = sphi 0, %s89
      %s107 = sphi 0, %s107
      %s109 = sphi 0, %s107
      %s110 = sphi 0, %s109
      %s124 = sphi 0, %s110
      %s128 = sphi 0, %s128
      %s130 = sphi 0, %s128
      %s131 = sphi 0, %s130
      %s145 = sphi 0, %s131
      %s151 = sphi 0, %s153
      %s154 = sphi 0, %s151
      %s155 = sphi 0, %s154
      %s171 = sphi 0, %s155
      %s177 = sphi 0, %s179
      %s180 = sphi 0, %s177
      %s181 = sphi 0, %s180
      %s197 = sphi 0, %s181
    $region4: #{tpu_custom_call.1} parent=1 // loop_header_branch
      %29 = sbr.rel (%p27) target = $region8
    $region5: #{tpu_custom_call.1} parent=1 // loop_body
      %s31 = ssub.s32 %s26, 1
      %s32 = ssub.s32 %s26, 2
      %s33 = sadd.s32 %s26, 1
      %s34 = ssub.s32 %s26, %s33
      %p35 = scmp.eq.s32.totalorder %s34, 0
      %s37 = sadd.s32 %s36, 1
      %s38 = scalar_select %p35, %s36, %s37
      %p41 = pneg %p35
      %p42 = scmp.eq.s32.totalorder %s26, 1
      %p43 = por %p41, %p42
      %p44 = scmp.ne.s32.totalorder %s36, %s39
      %p45 = scmp.eq.s32.totalorder %s26, 0
      %p46 = por %p44, %p45
      %p47 = scmp.ne.s32.totalorder %s36, %s39
      %p48 = scmp.eq.s32.totalorder %s31, 1
      %p49 = por %p47, %p48
      %p50 = scmp.ne.s32.totalorder %s39, %s40
      %p51 = scmp.eq.s32.totalorder %s31, 0
      %p52 = por %p50, %p51
      %p53 = scmp.ne.s32.totalorder %s39, %s40
      %p54 = scmp.eq.s32.totalorder %s32, 1
      %p55 = por %p53, %p54
      %p57 = scmp.ne.s32.totalorder %s40, %s56
      %p58 = scmp.eq.s32.totalorder %s32, 0
      %p59 = por %p57, %p58
      %s60 = ssub.s32 %s26, %s33
      %p61 = scmp.eq.s32.totalorder %s60, 0
      %s63 = sadd.s32 %s62, 1
      %s64 = scalar_select %p61, %s62, %s63
      %p67 = pneg %p61
      %p68 = scmp.eq.s32.totalorder %s26, 1
      %p69 = por %p67, %p68
      %p70 = scmp.ne.s32.totalorder %s62, %s65
      %p71 = scmp.eq.s32.totalorder %s26, 0
      %p72 = por %p70, %p71
      %p73 = scmp.ne.s32.totalorder %s62, %s65
      %p74 = scmp.eq.s32.totalorder %s31, 1
      %p75 = por %p73, %p74
      %p76 = scmp.ne.s32.totalorder %s65, %s66
      %p77 = scmp.eq.s32.totalorder %s31, 0
      %p78 = por %p76, %p77
      %p79 = scmp.ne.s32.totalorder %s65, %s66
      %p80 = scmp.eq.s32.totalorder %s32, 1
      %p81 = por %p79, %p80
      %p83 = scmp.ne.s32.totalorder %s66, %s82
      %p84 = scmp.eq.s32.totalorder %s32, 0
      %p85 = por %p83, %p84
      %s87 = sadd.s32 %s86, 1
      %p90 = scmp.eq.s32.totalorder %s26, 1
      %p91 = scmp.ne.s32.totalorder %s86, %s88
      %p92 = scmp.eq.s32.totalorder %s26, 0
      %p93 = por %p91, %p92
      %p94 = scmp.ne.s32.totalorder %s86, %s88
      %p95 = scmp.eq.s32.totalorder %s31, 1
      %p96 = por %p94, %p95
      %p97 = scmp.ne.s32.totalorder %s88, %s89
      %p98 = scmp.eq.s32.totalorder %s31, 0
      %p99 = por %p97, %p98
      %p100 = scmp.ne.s32.totalorder %s88, %s89
      %p101 = scmp.eq.s32.totalorder %s32, 1
      %p102 = por %p100, %p101
      %p104 = scmp.ne.s32.totalorder %s89, %s103
      %p105 = scmp.eq.s32.totalorder %s32, 0
      %p106 = por %p104, %p105
      %s108 = sadd.s32 %s107, 1
      %p111 = scmp.eq.s32.totalorder %s26, 1
      %p112 = scmp.ne.s32.totalorder %s107, %s109
      %p113 = scmp.eq.s32.totalorder %s26, 0
      %p114 = por %p112, %p113
      %p115 = scmp.ne.s32.totalorder %s107, %s109
      %p116 = scmp.eq.s32.totalorder %s31, 1
      %p117 = por %p115, %p116
      %p118 = scmp.ne.s32.totalorder %s109, %s110
      %p119 = scmp.eq.s32.totalorder %s31, 0
      %p120 = por %p118, %p119
      %p121 = scmp.ne.s32.totalorder %s109, %s110
      %p122 = scmp.eq.s32.totalorder %s32, 1
      %p123 = por %p121, %p122
      %p125 = scmp.ne.s32.totalorder %s110, %s124
      %p126 = scmp.eq.s32.totalorder %s32, 0
      %p127 = por %p125, %p126
      %s129 = sadd.s32 %s128, 1
      %p132 = scmp.eq.s32.totalorder %s26, 1
      %p133 = scmp.ne.s32.totalorder %s128, %s130
      %p134 = scmp.eq.s32.totalorder %s26, 0
      %p135 = por %p133, %p134
      %p136 = scmp.ne.s32.totalorder %s128, %s130
      %p137 = scmp.eq.s32.totalorder %s31, 1
      %p138 = por %p136, %p137
      %p139 = scmp.ne.s32.totalorder %s130, %s131
      %p140 = scmp.eq.s32.totalorder %s31, 0
      %p141 = por %p139, %p140
      %p142 = scmp.ne.s32.totalorder %s130, %s131
      %p143 = scmp.eq.s32.totalorder %s32, 1
      %p144 = por %p142, %p143
      %p146 = scmp.ne.s32.totalorder %s131, %s145
      %p147 = scmp.eq.s32.totalorder %s32, 0
      %p148 = por %p146, %p147
      %s149 = ssub.s32 %s26, %s33
      %p150 = scmp.eq.s32.totalorder %s149, 0
      %s152 = sadd.s32 %s151, 1
      %s153 = scalar_select %p150, %s151, %s152
      %p156 = pneg %p150
      %p157 = scmp.eq.s32.totalorder %s26, 1
      %p158 = por %p156, %p157
      %p159 = scmp.ne.s32.totalorder %s151, %s154
      %p160 = scmp.eq.s32.totalorder %s26, 0
      %p161 = por %p159, %p160
      %p162 = scmp.ne.s32.totalorder %s151, %s154
      %p163 = scmp.eq.s32.totalorder %s31, 1
      %p164 = por %p162, %p163
      %p165 = scmp.ne.s32.totalorder %s154, %s155
      %p166 = scmp.eq.s32.totalorder %s31, 0
      %p167 = por %p165, %p166
      %p168 = scmp.ne.s32.totalorder %s154, %s155
      %p169 = scmp.eq.s32.totalorder %s32, 1
      %p170 = por %p168, %p169
      %p172 = scmp.ne.s32.totalorder %s155, %s171
      %p173 = scmp.eq.s32.totalorder %s32, 0
      %p174 = por %p172, %p173
      %s175 = ssub.s32 %s26, %s33
      %p176 = scmp.eq.s32.totalorder %s175, 0
      %s178 = sadd.s32 %s177, 1
      %s179 = scalar_select %p176, %s177, %s178
      %p182 = pneg %p176
      %p183 = scmp.eq.s32.totalorder %s26, 1
      %p184 = por %p182, %p183
      %p185 = scmp.ne.s32.totalorder %s177, %s180
      %p186 = scmp.eq.s32.totalorder %s26, 0
      %p187 = por %p185, %p186
      %p188 = scmp.ne.s32.totalorder %s177, %s180
      %p189 = scmp.eq.s32.totalorder %s31, 1
      %p190 = por %p188, %p189
      %p191 = scmp.ne.s32.totalorder %s180, %s181
      %p192 = scmp.eq.s32.totalorder %s31, 0
      %p193 = por %p191, %p192
      %p194 = scmp.ne.s32.totalorder %s180, %s181
      %p195 = scmp.eq.s32.totalorder %s32, 1
      %p196 = por %p194, %p195
      %p198 = scmp.ne.s32.totalorder %s181, %s197
      %p199 = scmp.eq.s32.totalorder %s32, 0
      %p200 = por %p198, %p199
      %p201 = scmp.le.s32.totalorder 1, %s26
      %p202 = scmp.lt.s32.totalorder %s26, 3
      %p203 = pnand %p201, %p202
      %p204 = pneg %p203
      // Predicated region
      $region9: #{tpu_custom_call.1} parent=5 // pred_check
        _
      $region10: #{tpu_custom_call.1} parent=5 // pred_check_branch
        %206 = sbr.rel (%p203) target = $region12
      $region11: #{tpu_custom_call.1} parent=5 // pred_region
        %s207 = ssub.s32 %s26, 1
        // Predicated region
        $region13: #{tpu_custom_call.1} parent=11 // pred_check
          %p208 = pneg %p99
        $region14: #{tpu_custom_call.1} parent=11 // pred_check_branch
          %210 = sbr.rel (%p208) target = $region16
        $region15: #{tpu_custom_call.1} parent=11 // pred_region
          _
        $region16: #{tpu_custom_call.1} parent=11 // pred_fallthru
          _
        // Predicated region
        $region17: #{tpu_custom_call.1} parent=11 // pred_check
          %p211 = pneg %p120
        $region18: #{tpu_custom_call.1} parent=11 // pred_check_branch
          %213 = sbr.rel (%p211) target = $region20
        $region19: #{tpu_custom_call.1} parent=11 // pred_region
          _
        $region20: #{tpu_custom_call.1} parent=11 // pred_fallthru
          _
        // Predicated region
        $region21: #{tpu_custom_call.1} parent=11 // pred_check
          %p214 = pneg %p141
        $region22: #{tpu_custom_call.1} parent=11 // pred_check_branch
          %216 = sbr.rel (%p214) target = $region24
        $region23: #{tpu_custom_call.1} parent=11 // pred_region
          _
        $region24: #{tpu_custom_call.1} parent=11 // pred_fallthru
          _
      $region12: #{tpu_custom_call.1} parent=5 // pred_fallthru
        _
      %p217 = scmp.lt.s32.totalorder %s26, 2
      // Predicated region
      $region25: #{tpu_custom_call.1} parent=5 // pred_check
        %p218 = pneg %p217
      $region26: #{tpu_custom_call.1} parent=5 // pred_check_branch
        %220 = sbr.rel (%p218) target = $region28
      $region27: #{tpu_custom_call.1} parent=5 // pred_region
        // Predicated region
        $region29: #{tpu_custom_call.1} parent=27 // pred_check
          %p221 = pneg %p46
        $region30: #{tpu_custom_call.1} parent=27 // pred_check_branch
          %223 = sbr.rel (%p221) target = $region32
        $region31: #{tpu_custom_call.1} parent=27 // pred_region
          %s224 = sand.u32 %s36, 1
          %s225 = scalar_lea.sflag [#allocation4], %s224
          %s226 = sand.u32 %s36, 1
          %s227 = smul.addr %s226, 16
          %s228 = scalar_lea.vmem [#allocation3], %s227
          %s230 = ssub.s32 256, 256
          %231 = vsyncadd %s225, %s230
          %s232 = smul.addr %s26, 2
          %s233 = smul.addr %s232, 128
          %s234 = scalar_lea.hbm %s0, %s233
          %s236 = sshll.u32 %s228, 4
          %s237 = int_to_ptr.vmem [resolvable:$true] %s236
          %239 = dma.hbm_to_vmem [thread:$0]  %s234, 256, %s237, %s225
        $region32: #{tpu_custom_call.1} parent=27 // pred_fallthru
          _
        // Predicated region
        $region33: #{tpu_custom_call.1} parent=27 // pred_check
          %p240 = pneg %p72
        $region34: #{tpu_custom_call.1} parent=27 // pred_check_branch
          %242 = sbr.rel (%p240) target = $region36
        $region35: #{tpu_custom_call.1} parent=27 // pred_region
          %s243 = sand.u32 %s62, 1
          %s244 = scalar_lea.sflag [#allocation7], %s243
          %s245 = sand.u32 %s62, 1
          %s246 = smul.addr %s245, 16
          %s247 = scalar_lea.vmem [#allocation6], %s246
          %s249 = ssub.s32 256, 256
          %250 = vsyncadd %s244, %s249
          %s251 = smul.addr %s26, 2
          %s252 = smul.addr %s251, 128
          %s253 = scalar_lea.hbm %s1, %s252
          %s255 = sshll.u32 %s247, 4
          %s256 = int_to_ptr.vmem [resolvable:$true] %s255
          %258 = dma.hbm_to_vmem [thread:$0]  %s253, 256, %s256, %s244
        $region36: #{tpu_custom_call.1} parent=27 // pred_fallthru
          _
      $region28: #{tpu_custom_call.1} parent=5 // pred_fallthru
        _
      %p259 = scmp.le.s32.totalorder 1, %s26
      %p260 = scmp.lt.s32.totalorder %s26, 3
      %p261 = pnand %p259, %p260
      %p262 = pneg %p261
      // Predicated region
      $region37: #{tpu_custom_call.1} parent=5 // pred_check
        _
      $region38: #{tpu_custom_call.1} parent=5 // pred_check_branch
        %264 = sbr.rel (%p261) target = $region40
      $region39: #{tpu_custom_call.1} parent=5 // pred_region
        %s265 = ssub.s32 %s26, 1
        %s266 = sand.u32 %s39, 1
        %s267 = scalar_lea.sflag [#allocation4], %s266
        %s268 = sand.u32 %s39, 1
        %s269 = smul.addr %s268, 16
        %s270 = scalar_lea.vmem [#allocation3], %s269
        // Predicated region
        $region41: #{tpu_custom_call.1} parent=39 // pred_check
          %p271 = pneg %p52
        $region42: #{tpu_custom_call.1} parent=39 // pred_check_branch
          %273 = sbr.rel (%p271) target = $region44
        $region43: #{tpu_custom_call.1} parent=39 // pred_region
          %274 = dma.done %s267, 256
        $region44: #{tpu_custom_call.1} parent=39 // pred_fallthru
          _
        %s275 = sand.u32 %s65, 1
        %s276 = scalar_lea.sflag [#allocation7], %s275
        %s277 = sand.u32 %s65, 1
        %s278 = smul.addr %s277, 16
        %s279 = scalar_lea.vmem [#allocation6], %s278
        // Predicated region
        $region45: #{tpu_custom_call.1} parent=39 // pred_check
          %p280 = pneg %p78
        $region46: #{tpu_custom_call.1} parent=39 // pred_check_branch
          %282 = sbr.rel (%p280) target = $region48
        $region47: #{tpu_custom_call.1} parent=39 // pred_region
          %283 = dma.done %s276, 256
        $region48: #{tpu_custom_call.1} parent=39 // pred_fallthru
          _
        %s284 = sand.u32 %s39, 1
        %s285 = scalar_lea.sflag [#allocation4], %s284
        %s286 = sand.u32 %s39, 1
        %s287 = smul.addr %s286, 16
        %s288 = scalar_lea.vmem [#allocation3], %s287
        %p289 = pneg %p52
        %p290 = pneg %p49
        %s291 = sand.u32 %s65, 1
        %s292 = scalar_lea.sflag [#allocation7], %s291
        %s293 = sand.u32 %s65, 1
        %s294 = smul.addr %s293, 16
        %s295 = scalar_lea.vmem [#allocation6], %s294
        %p296 = pneg %p78
        %p297 = pneg %p75
        %p298 = pneg %p99
        %p299 = pneg %p96
        %p300 = pneg %p120
        %p301 = pneg %p117
        %p302 = pneg %p141
        %p303 = pneg %p138
        %p304 = pneg %p167
        %p305 = pneg %p164
        %s306 = sand.u32 %s154, 1
        %s307 = scalar_lea.sflag [#allocation5], %s306
        %s308 = sand.u32 %s154, 1
        %s309 = smul.addr %s308, 16
        %s310 = scalar_lea.vmem [#allocation8], %s309
        %p311 = pneg %p193
        %p312 = pneg %p190
        %s313 = sand.u32 %s180, 1
        %s314 = scalar_lea.sflag [#allocation10], %s313
        %s315 = sand.u32 %s180, 1
        %s316 = smul.addr %s315, 16
        %s317 = scalar_lea.vmem [#allocation9], %s316
        %v318 = vld [vmem:[%s270] sm:$0xff]
        %v319 = vld [vmem:[%s270 + $0x8] sm:$0xff]
        %v320 = vld [vmem:[%s279] sm:$0xff]
        %v321 = vld [vmem:[%s279 + $0x8] sm:$0xff]
        %v322 = vld [vmem:[%s2] sm:$0xff]
        %v323 = vld [vmem:[%s3] sm:$0xff]
        %s324 = sld [smem:[#allocation2]]
        %v325 = vadd.f32 %v318, %v320
        %v326 = vadd.f32 %v319, %v321
        %328 = vset.pattern.permute.xlu0 0
        %329 = vperm.xlu0 %328, %v323
        %v330 = vpop.permute.xlu0 %329
        %vm332 = vcmask 64512
        %v334 = vsel %vm332, %v322, 0
        %336 = vmatprep.subr.mxu0 0.0
        %337 = vmatpush1.msra.mxu0 0.0
        %338 = vmatprep.subr.mxu0 0.0
        %339 = vmatpush1.msra.mxu0 0.0
        %340 = vmatprep.subr.mxu0 0.0
        %341 = vmatpush1.msra.mxu0 0.0
        %342 = vmatprep.subr.mxu0 0.0
        %343 = vmatpush1.msra.mxu0 0.0
        %344 = vmatprep.subr.mxu0 0.0
        %345 = vmatpush1.msra.mxu0 0.0
        %346 = vmatprep.subr.mxu0 0.0
        %347 = vmatpush1.msra.mxu0 0.0
        %348 = vmatprep.subr.mxu0 0.0
        %349 = vmatpush1.msra.mxu0 0.0
        %350 = vmatprep.subr.mxu0 0.0
        %351 = vmatpush1.msra.mxu0 0.0
        %352 = vmatprep.subr.mxu0 0.0
        %353 = vmatpush1.msra.mxu0 0.0
        %354 = vmatprep.subr.mxu0 0.0
        %355 = vmatpush1.msra.mxu0 0.0
        %356 = vmatprep.subr.mxu0 0.0
        %357 = vmatpush1.msra.mxu0 0.0
        %358 = vmatprep.subr.mxu0 0.0
        %359 = vmatpush1.msra.mxu0 0.0
        %360 = vmatprep.subr.mxu0 0.0
        %361 = vmatpush1.msra.mxu0 0.0
        %362 = vmatprep.subr.mxu0 0.0
        %363 = vmatpush1.msra.mxu0 0.0
        %364 = vmatprep.subr.mxu0 0.0
        %365 = vmatpush1.msra.mxu0 0.0
        %366 = vmatprep.subr.mxu0 %v326
        %367 = vmatpush1.msra.mxu0 %v325
        %368 = vmatprep.subr.mxu0 0.0
        %369 = vmatpush2.msra.mxu0 0.0
        %370 = vmatprep.subr.mxu0 0.0
        %371 = vmatpush2.msra.mxu0 0.0
        %372 = vmatprep.subr.mxu0 0.0
        %373 = vmatpush2.msra.mxu0 0.0
        %374 = vmatprep.subr.mxu0 0.0
        %375 = vmatpush2.msra.mxu0 0.0
        %376 = vmatprep.subr.mxu0 0.0
        %377 = vmatpush2.msra.mxu0 0.0
        %378 = vmatprep.subr.mxu0 0.0
        %379 = vmatpush2.msra.mxu0 0.0
        %380 = vmatprep.subr.mxu0 0.0
        %381 = vmatpush2.msra.mxu0 0.0
        %382 = vmatprep.subr.mxu0 0.0
        %383 = vmatpush2.msra.mxu0 0.0
        %384 = vmatprep.subr.mxu0 0.0
        %385 = vmatpush2.msra.mxu0 0.0
        %386 = vmatprep.subr.mxu0 0.0
        %387 = vmatpush2.msra.mxu0 0.0
        %388 = vmatprep.subr.mxu0 0.0
        %389 = vmatpush2.msra.mxu0 0.0
        %390 = vmatprep.subr.mxu0 0.0
        %391 = vmatpush2.msra.mxu0 0.0
        %392 = vmatprep.subr.mxu0 0.0
        %393 = vmatpush2.msra.mxu0 0.0
        %394 = vmatprep.subr.mxu0 0.0
        %395 = vmatpush2.msra.mxu0 0.0
        %396 = vmatprep.subr.mxu0 0.0
        %397 = vmatpush2.msra.mxu0 0.0
        %398 = vmatprep.subr.mxu0 0.0
        %399 = vmatpush2.msra.mxu0 0.0
        %400 = vmatprep.mubr.f32.mxu0 0.0
        %401 = vmatmul.mubr.f32.gmra.mxu0 %v334
        %v402 = vpop.f32.mrf.mxu0
        %v403 = vadd.f32 %v330, %v402
        %v404 = vpop.f32.mrf.mxu0
        %v405 = vadd.f32 %v330, %v404
        %406 = vdwg.mxu0
        %407 = vmatprep.subr.mxu0 0.0
        %408 = vmatpush1.xpose.msra.mxu0 0.0
        %409 = vmatprep.subr.mxu0 0.0
        %410 = vmatpush1.xpose.msra.mxu0 0.0
        %411 = vmatprep.subr.mxu0 0.0
        %412 = vmatpush1.xpose.msra.mxu0 0.0
        %413 = vmatprep.subr.mxu0 0.0
        %414 = vmatpush1.xpose.msra.mxu0 0.0
        %415 = vmatprep.subr.mxu0 0.0
        %416 = vmatpush1.xpose.msra.mxu0 0.0
        %417 = vmatprep.subr.mxu0 0.0
        %418 = vmatpush1.xpose.msra.mxu0 0.0
        %419 = vmatprep.subr.mxu0 0.0
        %420 = vmatpush1.xpose.msra.mxu0 0.0
        %421 = vmatprep.subr.mxu0 0.0
        %422 = vmatpush1.xpose.msra.mxu0 0.0
        %423 = vmatprep.subr.mxu0 0.0
        %424 = vmatpush1.xpose.msra.mxu0 0.0
        %425 = vmatprep.subr.mxu0 0.0
        %426 = vmatpush1.xpose.msra.mxu0 0.0
        %427 = vmatprep.subr.mxu0 0.0
        %428 = vmatpush1.xpose.msra.mxu0 0.0
        %429 = vmatprep.subr.mxu0 0.0
        %430 = vmatpush1.xpose.msra.mxu0 0.0
        %431 = vmatprep.subr.mxu0 0.0
        %432 = vmatpush1.xpose.msra.mxu0 0.0
        %433 = vmatprep.subr.mxu0 0.0
        %434 = vmatpush1.xpose.msra.mxu0 0.0
        %435 = vmatprep.subr.mxu0 0.0
        %436 = vmatpush1.xpose.msra.mxu0 0.0
        %437 = vmatprep.subr.mxu0 %v405
        %438 = vmatpush1.xpose.msra.mxu0 %v403
        %439 = vmatprep.subr.mxu0 0.0
        %440 = vmatpush2.xpose.msra.mxu0 0.0
        %441 = vmatprep.subr.mxu0 0.0
        %442 = vmatpush2.xpose.msra.mxu0 0.0
        %443 = vmatprep.subr.mxu0 0.0
        %444 = vmatpush2.xpose.msra.mxu0 0.0
        %445 = vmatprep.subr.mxu0 0.0
        %446 = vmatpush2.xpose.msra.mxu0 0.0
        %447 = vmatprep.subr.mxu0 0.0
        %448 = vmatpush2.xpose.msra.mxu0 0.0
        %449 = vmatprep.subr.mxu0 0.0
        %450 = vmatpush2.xpose.msra.mxu0 0.0
        %451 = vmatprep.subr.mxu0 0.0
        %452 = vmatpush2.xpose.msra.mxu0 0.0
        %453 = vmatprep.subr.mxu0 0.0
        %454 = vmatpush2.xpose.msra.mxu0 0.0
        %455 = vmatprep.subr.mxu0 0.0
        %456 = vmatpush2.xpose.msra.mxu0 0.0
        %457 = vmatprep.subr.mxu0 0.0
        %458 = vmatpush2.xpose.msra.mxu0 0.0
        %459 = vmatprep.subr.mxu0 0.0
        %460 = vmatpush2.xpose.msra.mxu0 0.0
        %461 = vmatprep.subr.mxu0 0.0
        %462 = vmatpush2.xpose.msra.mxu0 0.0
        %463 = vmatprep.subr.mxu0 0.0
        %464 = vmatpush2.xpose.msra.mxu0 0.0
        %465 = vmatprep.subr.mxu0 0.0
        %466 = vmatpush2.xpose.msra.mxu0 0.0
        %467 = vmatprep.subr.mxu0 0.0
        %468 = vmatpush2.xpose.msra.mxu0 0.0
        %469 = vmatprep.subr.mxu0 0.0
        %470 = vmatpush2.xpose.msra.mxu0 0.0
        %471 = vmatprep.mubr.f32.mxu0 %v405
        %472 = vmatmul.mubr.f32.gmra.mxu0 %v403
        %v473 = vpop.f32.mrf.mxu0
        %v474 = vadd.f32 0.0, %v473
        %v475 = vpop.f32.mrf.mxu0
        %476 = vdwg.mxu0
        %v477 = vsel %vm332, %v474, inf
        %478 = vmin.xlane.f32.xlu0 %v477
        %v479 = vpop.xlane.xlu0 %478
        %v480 = vsub.f32 %v479, %v474
        %v481 = vmul.f32 %v480, 1.442695
        %v482 = vpow.pop %v481
        %v483 = vsel %vm332, %v482, 0.0
        %484 = vadd.xlane.f32.xlu0 %v483
        %v485 = vpop.xlane.xlu0 %484
        %v486 = vrcp.pop %v485
        %v487 = vmul.f32 %v482, %v486
        %v489 = vsel %vm332, %v487, 0
        %491 = vmatprep.subr.mxu0 0.0
        %492 = vmatpush1.msra.mxu0 0.0
        %493 = vmatprep.subr.mxu0 0.0
        %494 = vmatpush1.msra.mxu0 0.0
        %495 = vmatprep.subr.mxu0 0.0
        %496 = vmatpush1.msra.mxu0 0.0
        %497 = vmatprep.subr.mxu0 0.0
        %498 = vmatpush1.msra.mxu0 0.0
        %499 = vmatprep.subr.mxu0 0.0
        %500 = vmatpush1.msra.mxu0 0.0
        %501 = vmatprep.subr.mxu0 0.0
        %502 = vmatpush1.msra.mxu0 0.0
        %503 = vmatprep.subr.mxu0 0.0
        %504 = vmatpush1.msra.mxu0 0.0
        %505 = vmatprep.subr.mxu0 0.0
        %506 = vmatpush1.msra.mxu0 0.0
        %507 = vmatprep.subr.mxu0 0.0
        %508 = vmatpush1.msra.mxu0 0.0
        %509 = vmatprep.subr.mxu0 0.0
        %510 = vmatpush1.msra.mxu0 0.0
        %511 = vmatprep.subr.mxu0 0.0
        %512 = vmatpush1.msra.mxu0 0.0
        %513 = vmatprep.subr.mxu0 0.0
        %514 = vmatpush1.msra.mxu0 0.0
        %515 = vmatprep.subr.mxu0 0.0
        %516 = vmatpush1.msra.mxu0 0.0
        %517 = vmatprep.subr.mxu0 0.0
        %518 = vmatpush1.msra.mxu0 0.0
        %519 = vmatprep.subr.mxu0 0.0
        %520 = vmatpush1.msra.mxu0 0.0
        %521 = vmatprep.subr.mxu0 %v405
        %522 = vmatpush1.msra.mxu0 %v403
        %523 = vmatprep.subr.mxu0 0.0
        %524 = vmatpush2.msra.mxu0 0.0
        %525 = vmatprep.subr.mxu0 0.0
        %526 = vmatpush2.msra.mxu0 0.0
        %527 = vmatprep.subr.mxu0 0.0
        %528 = vmatpush2.msra.mxu0 0.0
        %529 = vmatprep.subr.mxu0 0.0
        %530 = vmatpush2.msra.mxu0 0.0
        %531 = vmatprep.subr.mxu0 0.0
        %532 = vmatpush2.msra.mxu0 0.0
        %533 = vmatprep.subr.mxu0 0.0
        %534 = vmatpush2.msra.mxu0 0.0
        %535 = vmatprep.subr.mxu0 0.0
        %536 = vmatpush2.msra.mxu0 0.0
        %537 = vmatprep.subr.mxu0 0.0
        %538 = vmatpush2.msra.mxu0 0.0
        %539 = vmatprep.subr.mxu0 0.0
        %540 = vmatpush2.msra.mxu0 0.0
        %541 = vmatprep.subr.mxu0 0.0
        %542 = vmatpush2.msra.mxu0 0.0
        %543 = vmatprep.subr.mxu0 0.0
        %544 = vmatpush2.msra.mxu0 0.0
        %545 = vmatprep.subr.mxu0 0.0
        %546 = vmatpush2.msra.mxu0 0.0
        %547 = vmatprep.subr.mxu0 0.0
        %548 = vmatpush2.msra.mxu0 0.0
        %549 = vmatprep.subr.mxu0 0.0
        %550 = vmatpush2.msra.mxu0 0.0
        %551 = vmatprep.subr.mxu0 0.0
        %552 = vmatpush2.msra.mxu0 0.0
        %553 = vmatprep.subr.mxu0 0.0
        %554 = vmatpush2.msra.mxu0 0.0
        %555 = vmatprep.mubr.f32.mxu0 0.0
        %556 = vmatmul.mubr.f32.gmra.mxu0 %v489
        %v557 = vpop.f32.mrf.mxu0
        %v558 = vadd.f32 0.0, %v557
        %v559 = vpop.f32.mrf.mxu0
        %v560 = vadd.f32 0.0, %v559
        %561 = vdwg.mxu0
        %v562 = vstv %s324
        %v563 = vmul.f32 %v562, %v558
        %v564 = vmul.f32 %v562, %v560
        %v565 = vadd.f32 %v563, %v403
        %v566 = vadd.f32 %v564, %v405
        %v567 = vxor.u32 %v565, 2147483648
        %v568 = vxor.u32 %v566, 2147483648
        %v569 = vmul.f32 %v567, 1.442695
        %v570 = vpow.pop %v569
        %v571 = vmul.f32 %v568, 1.442695
        %v572 = vpow.pop %v571
        %v573 = vadd.f32 %v570, 1.0
        %v574 = vadd.f32 %v572, 1.0
        %v575 = vrcp.pop %v573
        %v576 = vmul.f32 1.0, %v575
        %v577 = vrcp.pop %v574
        %v578 = vmul.f32 1.0, %v577
        %v579 = vmul.f32 %v576, %v403
        %v580 = vmul.f32 %v578, %v405
        %v581 = vmul.f32 %v318, 2.0
        %v582 = vmul.f32 %v319, 2.0
        %v583 = vadd.f32 %v579, %v581
        %v584 = vadd.f32 %v580, %v582
        %585 = vst [vmem:[%s310] sm:$0xff] %v583
        %586 = vst [vmem:[%s310 + $0x8] sm:$0xff] %v584
        %v587 = vsub.f32 1.0, %v576
        %v588 = vsub.f32 1.0, %v578
        %v589 = vmul.f32 %v587, %v403
        %v590 = vmul.f32 %v588, %v405
        %v591 = vmul.f32 %v320, 2.0
        %v592 = vmul.f32 %v321, 2.0
        %v593 = vadd.f32 %v589, %v591
        %v594 = vadd.f32 %v590, %v592
        %595 = vst [vmem:[%s317] sm:$0xff] %v593
        %596 = vst [vmem:[%s317 + $0x8] sm:$0xff] %v594
        %s597 = sand.u32 %s154, 1
        %s598 = scalar_lea.sflag [#allocation5], %s597
        %s599 = sand.u32 %s154, 1
        %s600 = smul.addr %s599, 16
        %s601 = scalar_lea.vmem [#allocation8], %s600
        %s602 = sand.u32 %s180, 1
        %s603 = scalar_lea.sflag [#allocation10], %s602
        %s604 = sand.u32 %s180, 1
        %s605 = smul.addr %s604, 16
        %s606 = scalar_lea.vmem [#allocation9], %s605
        // Predicated region
        $region49: #{tpu_custom_call.1} parent=39 // pred_check
          %p607 = pneg %p164
        $region50: #{tpu_custom_call.1} parent=39 // pred_check_branch
          %609 = sbr.rel (%p607) target = $region52
        $region51: #{tpu_custom_call.1} parent=39 // pred_region
          %s611 = ssub.s32 256, 256
          %612 = vsyncadd %s598, %s611
          %s613 = smul.addr %s31, 2
          %s614 = smul.addr %s613, 128
          %s615 = scalar_lea.hbm %s5, %s614
          %s617 = sshll.u32 %s601, 4
          %s618 = int_to_ptr.vmem [resolvable:$true] %s617
          %620 = dma.vmem_to_hbm [thread:$0]  %s618, 256, %s615, %s598
        $region52: #{tpu_custom_call.1} parent=39 // pred_fallthru
          _
        // Predicated region
        $region53: #{tpu_custom_call.1} parent=39 // pred_check
          %p621 = pneg %p190
        $region54: #{tpu_custom_call.1} parent=39 // pred_check_branch
          %623 = sbr.rel (%p621) target = $region56
        $region55: #{tpu_custom_call.1} parent=39 // pred_region
          %s625 = ssub.s32 256, 256
          %626 = vsyncadd %s603, %s625
          %s627 = smul.addr %s31, 2
          %s628 = smul.addr %s627, 128
          %s629 = scalar_lea.hbm %s6, %s628
          %s631 = sshll.u32 %s606, 4
          %s632 = int_to_ptr.vmem [resolvable:$true] %s631
          %634 = dma.vmem_to_hbm [thread:$0]  %s632, 256, %s629, %s603
        $region56: #{tpu_custom_call.1} parent=39 // pred_fallthru
          _
      $region40: #{tpu_custom_call.1} parent=5 // pred_fallthru
        _
      %p635 = scmp.le.s32.totalorder 2, %s26
      // Predicated region
      $region57: #{tpu_custom_call.1} parent=5 // pred_check
        %p636 = pneg %p635
      $region58: #{tpu_custom_call.1} parent=5 // pred_check_branch
        %638 = sbr.rel (%p636) target = $region60
      $region59: #{tpu_custom_call.1} parent=5 // pred_region
        %s639 = ssub.s32 %s26, 2
        // Predicated region
        $region61: #{tpu_custom_call.1} parent=59 // pred_check
          %p640 = pneg %p170
        $region62: #{tpu_custom_call.1} parent=59 // pred_check_branch
          %642 = sbr.rel (%p640) target = $region64
        $region63: #{tpu_custom_call.1} parent=59 // pred_region
          %s643 = sand.u32 %s155, 1
          %s644 = scalar_lea.sflag [#allocation5], %s643
          %s645 = sand.u32 %s155, 1
          %s646 = smul.addr %s645, 16
          %s647 = scalar_lea.vmem [#allocation8], %s646
          %648 = dma.done %s644, 256
        $region64: #{tpu_custom_call.1} parent=59 // pred_fallthru
          _
        // Predicated region
        $region65: #{tpu_custom_call.1} parent=59 // pred_check
          %p649 = pneg %p196
        $region66: #{tpu_custom_call.1} parent=59 // pred_check_branch
          %651 = sbr.rel (%p649) target = $region68
        $region67: #{tpu_custom_call.1} parent=59 // pred_region
          %s652 = sand.u32 %s181, 1
          %s653 = scalar_lea.sflag [#allocation10], %s652
          %s654 = sand.u32 %s181, 1
          %s655 = smul.addr %s654, 16
          %s656 = scalar_lea.vmem [#allocation9], %s655
          %657 = dma.done %s653, 256
        $region68: #{tpu_custom_call.1} parent=59 // pred_fallthru
          _
      $region60: #{tpu_custom_call.1} parent=5 // pred_fallthru
        _
    $region6: #{tpu_custom_call.1} parent=1 // loop_footer
      %s30 = sadd.s32 1, %s26
    $region7: #{tpu_custom_call.1} parent=1 // loop_footer_branch
      %25 = sbr.rel target = $region3
    $region8: #{tpu_custom_call.1} parent=1 // loop_exit
      _
    %658 = vsyncpa [#allocation4], 1
    %s659 = scalar_lea.sflag [#allocation4], 1
    %660 = vsyncpa %s659, 1
    %661 = vsyncpa [#allocation7], 1
    %s662 = scalar_lea.sflag [#allocation7], 1
    %663 = vsyncpa %s662, 1
    %664 = vsyncpa [#allocation5], 1
    %s665 = scalar_lea.sflag [#allocation5], 1
    %666 = vsyncpa %s665, 1
    %667 = vsyncpa [#allocation10], 1
    %s668 = scalar_lea.sflag [#allocation10], 1
    %669 = vsyncpa %s668, 1

</llo_original>
